<compile_context>
chip_gen: v7x
topology: tpu7x:2x2x1
jax: 0.10.0
libtpu: 0.0.40
codegen_flags: <defaults>
</compile_context>

<pallas_src>
import functools

import jax
import jax.numpy as jnp
from jax import lax
from jax.experimental import pallas as pl
from jax.experimental.pallas import tpu as pltpu

_LANE = 128


def _wbce_kernel(x_ref, t_ref, out_ref, *, sub_rows, sub_tiles, total,
                 tiles_per_chunk, num_chunks, unroll):
    """Accumulates four partial-sum slabs for one chunk of the flattened input.

    grid = (num_chunks, tiles_per_chunk); axis 1 is the reduction axis.
      x_ref, t_ref : (tile_rows, 128) VMEM tiles, tile_rows = sub_rows*sub_tiles
      out_ref      : (1, 32, 128) f32, resident across axis 1. Sublane rows:
                     [ 0: 8] sum(pos * bce)   [ 8:16] sum(neg * bce)
                     [16:24] sum(pos)         [24:32] sum(neg)
    """
    c = pl.program_id(0)
    j = pl.program_id(1)

    @pl.when(j == 0)
    def _():
        out_ref[...] = jnp.zeros_like(out_ref)

    tile_rows = sub_rows * sub_tiles
    tile_elems = tile_rows * _LANE

    def accumulate(valid_elems):
        # valid_elems: None (whole tile valid) or a traced int32 scalar giving
        # the number of valid row-major elements from this tile's start.
        if valid_elems is not None:
            # Hoisted outside the loop (JAX does not CSE broadcasts).
            elem_iota = (
                lax.broadcasted_iota(jnp.int32, (sub_rows, _LANE), 0) * _LANE
                + lax.broadcasted_iota(jnp.int32, (sub_rows, _LANE), 1))

        def body(i, carry):
            pbce, nbce, pcnt, ncnt = carry
            r0 = pl.multiple_of(i * sub_rows, sub_rows)
            x = x_ref[pl.ds(r0, sub_rows), :].astype(jnp.float32)
            t = t_ref[pl.ds(r0, sub_rows), :].astype(jnp.float32)
            # Numerically-stable BCE-with-logits (same form PyTorch uses):
            #   max(x, 0) - x*t + log1p(exp(-|x|))
            bce = jnp.maximum(x, 0.0) - x * t + jnp.log1p(jnp.exp(-jnp.abs(x)))
            p = t > 0.5
            n = t < 0.5
            if valid_elems is not None:
                ok = (r0 * _LANE + elem_iota) < valid_elems
                p = jnp.logical_and(p, ok)
                n = jnp.logical_and(n, ok)
            # Selects instead of cmp+cast+mul; NaN/garbage in masked-out lanes
            # of a partial block cannot leak through a select.
            pbce = pbce + jnp.where(p, bce, 0.0)
            nbce = nbce + jnp.where(n, bce, 0.0)
            pcnt = pcnt + jnp.where(p, 1.0, 0.0)
            ncnt = ncnt + jnp.where(n, 1.0, 0.0)
            return pbce, nbce, pcnt, ncnt

        zero = jnp.zeros((sub_rows, _LANE), jnp.float32)
        pbce, nbce, pcnt, ncnt = lax.fori_loop(
            0, sub_tiles, body, (zero, zero, zero, zero),
            unroll=max(1, min(unroll, sub_tiles)))

        def fold(v):
            # (sub_rows,128) -> (8,128): splitting only the sublane-major dim is
            # layout-clean; pure VALU adds, once per grid step.
            if sub_rows == 8:
                return v
            return jnp.sum(v.reshape(sub_rows // 8, 8, _LANE), axis=0)

        out_ref[0, 0:8, :] += fold(pbce)
        out_ref[0, 8:16, :] += fold(nbce)
        out_ref[0, 16:24, :] += fold(pcnt)
        out_ref[0, 24:32, :] += fold(ncnt)

    if num_chunks * tiles_per_chunk * tile_elems == total:
        # Every grid tile is exactly full: single unmasked fast path.
        accumulate(None)
    else:
        rem = total - (c * tiles_per_chunk + j) * tile_elems  # valid elems left

        @pl.when(rem >= tile_elems)
        def _():
            accumulate(None)          # hot path: full tiles, no mask work

        @pl.when(jnp.logical_and(rem > 0, rem < tile_elems))
        def _():
            accumulate(rem)           # cold path: the single boundary tile
        # rem <= 0: over-provisioned trailing tile (chunk split) -> contributes 0


def _round_up(a, b):
    return -(-a // b) * b


def _sublane(dtype):
    # Native sublane tile height per element size (f32:8, bf16/f16:16, i8:32).
    return {1: 32, 2: 16, 4: 8}.get(jnp.dtype(dtype).itemsize, 8)


def _device_kind():
    try:
        return jax.devices()[0].device_kind.lower()
    except Exception:
        return ""


def _default_max_tile_rows():
    # v6e/v7x: 32 MiB scoped-VMEM default -> 8192-row f32 blocks (4 MiB) x
    # 2 inputs x 2 pipeline buffers = 16 MiB. v5e (16 MiB default): 4096.
    kind = _device_kind()
    return 8192 if ("v6" in kind or "v7" in kind) else 4096


def _default_num_chunks():
    # The chunk axis only pays off when genuinely split across TensorCores
    # (v7x has 2 per chip); on 1-TC parts it would just serialize.
    return 2 if "v7" in _device_kind() else 1


def weight_bce_loss(logits, targets, weight_pos=0.25, weight_neg=0.75, *,
                    max_tile_rows=None, num_chunks=None, unroll=8):
    """JAX/Pallas equivalent of Weight_BCELoss.forward."""
    assert logits.size == targets.size
    if max_tile_rows is None:
        max_tile_rows = _default_max_tile_rows()
    if num_chunks is None:
        num_chunks = _default_num_chunks()

    def prep(a):
        if a.dtype == jnp.bool_:
            return a.astype(jnp.int8)   # 1 B/elem; cast to f32 per slab in-kernel
        if (jnp.issubdtype(a.dtype, jnp.floating)
                or jnp.issubdtype(a.dtype, jnp.integer)):
            return a                    # keep native (possibly narrow) dtype
        return a.astype(jnp.float32)

    x = prep(logits).reshape(-1)
    t = prep(targets).reshape(-1)
    total = x.shape[0]

    # View the flat input as (rows, 128). Only the sub-128 lane remainder is
    # physically padded (values irrelevant: excluded by the in-kernel element
    # mask); the row remainder of the last tile is masked inside the kernel,
    # so no full-tensor pad/copy ever happens.
    # TODO(synk): a fully copy-free path for total % 128 != 0 would need a
    # manual-DMA (memory_space=pl.ANY) kernel; the pad below is < 128 elements.
    lane_pad = (-total) % _LANE
    if lane_pad:
        x = jnp.pad(x, (0, lane_pad))
        t = jnp.pad(t, (0, lane_pad))
    rows = (total + lane_pad) // _LANE
    x2 = x.reshape(rows, _LANE)
    t2 = t.reshape(rows, _LANE)

    # Sublane granularity so every (sub_rows, 128) in-kernel slice is
    # native-tile aligned for BOTH inputs (handles mixed f32/bf16/int8).
    sub_rows = max(_sublane(x2.dtype), _sublane(t2.dtype))
    num_chunks = max(1, min(num_chunks, pl.cdiv(rows, sub_rows)))
    rows_per_chunk = pl.cdiv(rows, num_chunks)
    tile_rows = min(_round_up(max_tile_rows, sub_rows),
                    _round_up(rows_per_chunk, sub_rows))
    sub_tiles = tile_rows // sub_rows
    tiles_per_chunk = pl.cdiv(rows_per_chunk, tile_rows)
    n_blocks = pl.cdiv(rows, tile_rows)       # real blocks in the (rows,128) view
    eff_unroll = max(1, (unroll * 8) // sub_rows)

    kernel = functools.partial(
        _wbce_kernel, sub_rows=sub_rows, sub_tiles=sub_tiles, total=total,
        tiles_per_chunk=tiles_per_chunk, num_chunks=num_chunks,
        unroll=eff_unroll)

    if num_chunks * tiles_per_chunk == n_blocks:
        in_map = lambda c, j: (c * tiles_per_chunk + j, 0)
    else:
        # Clamp so over-provisioned trailing tiles (chunk split not dividing
        # the block count) re-read the last real block instead of running off
        # the array; their contribution is masked to zero in the kernel.
        in_map = lambda c, j: (jnp.minimum(c * tiles_per_chunk + j,
                                           n_blocks - 1), 0)

    cost = pl.CostEstimate(
        flops=16 * rows * _LANE,
        transcendentals=2 * rows * _LANE,
        bytes_accessed=(x2.size * x2.dtype.itemsize
                        + t2.size * t2.dtype.itemsize
                        + num_chunks * 32 * _LANE * 4))

    chunk_sem = (pltpu.CORE_PARALLEL
                 if (num_chunks > 1 and "v7" in _device_kind())
                 else pltpu.PARALLEL)

    stats = pl.pallas_call(
        kernel,
        out_shape=jax.ShapeDtypeStruct((num_chunks, 32, _LANE), jnp.float32),
        grid_spec=pltpu.PrefetchScalarGridSpec(
            num_scalar_prefetch=0,
            grid=(num_chunks, tiles_per_chunk),
            in_specs=[pl.BlockSpec((tile_rows, _LANE), in_map),
                      pl.BlockSpec((tile_rows, _LANE), in_map)],
            out_specs=pl.BlockSpec((1, 32, _LANE), lambda c, j: (c, 0, 0)),
        ),
        compiler_params=pltpu.CompilerParams(
            dimension_semantics=(chunk_sem, pltpu.ARBITRARY)),
        cost_estimate=cost,
    )(x2, t2)

    # Tiny glue: one cross-lane/chunk reduction plus the scalar combine.
    sums = jnp.sum(stats.reshape(num_chunks, 4, 8 * _LANE), axis=(0, 2))
    pos_loss, neg_loss, pos_cnt, neg_cnt = sums[0], sums[1], sums[2], sums[3]
    # TODO(synk): PyTorch reads pos/neg counts via .item() (host sync); here
    # they stay on-device — the forward value is identical.
    return (weight_pos * pos_loss / (pos_cnt + 1e-12)
            + weight_neg * neg_loss / (neg_cnt + 1e-12))


def _reference(logits, targets, weight_pos=0.25, weight_neg=0.75):
    """Pure-JAX reference mirroring the PyTorch forward."""
    x = logits.reshape(-1).astype(jnp.float32)
    t = targets.reshape(-1).astype(jnp.float32)
    bce = jnp.maximum(x, 0.0) - x * t + jnp.log1p(jnp.exp(-jnp.abs(x)))
    pos = (t > 0.5).astype(jnp.float32)
    neg = (t < 0.5).astype(jnp.float32)
    pos_w = jnp.sum(pos) + 1e-12
    neg_w = jnp.sum(neg) + 1e-12
    loss = jnp.sum(weight_pos * pos * bce / pos_w
                   + weight_neg * neg * bce / neg_w)
    return loss  # .mean() of a scalar is itself


if __name__ == "__main__":
    weight_pos, weight_neg = 0.25, 0.75
    key = jax.random.PRNGKey(0)
    k1, k2, k3, k4 = jax.random.split(key, 4)

    # Case 1: lane/tile-aligned NCHW, f32 logits + f32 {0,1} targets
    # (static full-tile fast path, zero copies in the wrapper).
    N, C, H, W = 2, 4, 16, 16
    logits = jax.random.normal(k1, (N, C, H, W), dtype=jnp.float32)
    targets = (jax.random.uniform(k2, (N, C, H, W)) > 0.5).astype(jnp.float32)
    loss = jax.block_until_ready(
        weight_bce_loss(logits, targets, weight_pos, weight_neg))
    ref = _reference(logits, targets, weight_pos, weight_neg)
    assert jnp.allclose(loss, ref, atol=1e-5, rtol=1e-5), (loss, ref)

    # Case 2: ragged size + narrow (bf16) targets + 2-chunk grid; small
    # max_tile_rows so the multi-tile, in-kernel-masked-tail path is exercised.
    logits2 = jax.random.normal(k3, (3, 5, 37, 29), dtype=jnp.float32)
    targets2 = (jax.random.uniform(k4, (3, 5, 37, 29)) > 0.5).astype(jnp.bfloat16)
    loss2 = jax.block_until_ready(
        weight_bce_loss(logits2, targets2, weight_pos, weight_neg,
                        max_tile_rows=32, num_chunks=2))
    ref2 = _reference(logits2, targets2, weight_pos, weight_neg)
    assert jnp.allclose(loss2, ref2, atol=1e-4, rtol=1e-4), (loss2, ref2)

    print("KERNEL_OK")
</pallas_src>

<mosaic_0001>
module attributes {stable_mosaic.version = 11 : i64} {
  func.func @_wbce_kernel(%arg0: i32, %arg1: i32, %arg2: memref<16x128xf32, #tpu.memory_space<vmem>>, %arg3: memref<16x128xf32, #tpu.memory_space<vmem>>, %arg4: memref<1x32x128xf32, #tpu.memory_space<vmem>>) attributes {dimension_semantics = [#tpu.dimension_semantics<parallel>, #tpu.dimension_semantics<arbitrary>], iteration_bounds = array<i64: 1, 1>, scalar_prefetch = 0 : i64, scratch_operands = 0 : i64, tpu.core_type = #tpu.core_type<tc>, window_params = [{transform_indices = @transform_0, window_bounds = array<i64: 16, 128>}, {transform_indices = @transform_1, window_bounds = array<i64: 16, 128>}, {transform_indices = @transform_2, window_bounds = array<i64: 1, 32, 128>}]} {
    %c0_i32 = arith.constant 0 : i32
    %0 = arith.cmpi eq, %arg1, %c0_i32 : i32
    %1 = arith.extui %0 : i1 to i32
    %c0_i32_0 = arith.constant 0 : i32
    %2 = arith.cmpi ne, %1, %c0_i32_0 : i32
    scf.if %2 {
      %cst_47 = arith.constant 0.000000e+00 : f32
      %96 = vector.broadcast %cst_47 : f32 to vector<1x32x128xf32>
      %c0_48 = arith.constant 0 : index
      %c0_49 = arith.constant 0 : index
      %c0_50 = arith.constant 0 : index
      %97 = vector.load %arg4[%c0_48, %c0_49, %c0_50] : memref<1x32x128xf32, #tpu.memory_space<vmem>>, vector<1x32x128xf32>
      tpu.vector_store %arg4[%c0_48, %c0_49, %c0_50], %96 {strides = array<i32>} : memref<1x32x128xf32, #tpu.memory_space<vmem>>, vector<1x32x128xf32>,
    } else {
    }
    %cst = arith.constant 0.000000e+00 : f32
    %3 = vector.broadcast %cst : f32 to vector<8x128xf32>
    %c0_i32_1 = arith.constant 0 : i32
    %c8_i32 = arith.constant 8 : i32
    %4 = arith.muli %c0_i32_1, %c8_i32 : i32
    %5 = tpu.assume_multiple %4, 8 : i32
    %6 = arith.index_cast %5 : i32 to index
    %c0 = arith.constant 0 : index
    %7 = vector.load %arg2[%6, %c0] : memref<16x128xf32, #tpu.memory_space<vmem>>, vector<8x128xf32>
    %8 = arith.index_cast %5 : i32 to index
    %c0_2 = arith.constant 0 : index
    %9 = vector.load %arg3[%8, %c0_2] : memref<16x128xf32, #tpu.memory_space<vmem>>, vector<8x128xf32>
    %cst_3 = arith.constant 0.000000e+00 : f32
    %10 = vector.broadcast %cst_3 : f32 to vector<8x128xf32>
    %11 = arith.maximumf %7, %10 : vector<8x128xf32>
    %12 = arith.mulf %7, %9 : vector<8x128xf32>
    %13 = arith.subf %11, %12 : vector<8x128xf32>
    %14 = math.absf %7 : vector<8x128xf32>
    %cst_4 = arith.constant 0.000000e+00 : f32
    %15 = vector.broadcast %cst_4 : f32 to vector<8x128xf32>
    %16 = arith.subf %15, %14 : vector<8x128xf32>
    %17 = math.exp %16 : vector<8x128xf32>
    %18 = math.log1p %17 : vector<8x128xf32>
    %19 = arith.addf %13, %18 : vector<8x128xf32>
    %cst_5 = arith.constant 5.000000e-01 : f32
    %20 = vector.broadcast %cst_5 : f32 to vector<8x128xf32>
    %21 = arith.cmpf ogt, %9, %20 : vector<8x128xf32>
    %cst_6 = arith.constant 5.000000e-01 : f32
    %22 = vector.broadcast %cst_6 : f32 to vector<8x128xf32>
    %23 = arith.cmpf olt, %9, %22 : vector<8x128xf32>
    %cst_7 = arith.constant 0.000000e+00 : f32
    %24 = vector.broadcast %cst_7 : f32 to vector<8x128xf32>
    %25 = arith.select %21, %19, %24 : vector<8x128xi1>, vector<8x128xf32>
    %26 = arith.addf %3, %25 : vector<8x128xf32>
    %cst_8 = arith.constant 0.000000e+00 : f32
    %27 = vector.broadcast %cst_8 : f32 to vector<8x128xf32>
    %28 = arith.select %23, %19, %27 : vector<8x128xi1>, vector<8x128xf32>
    %29 = arith.addf %3, %28 : vector<8x128xf32>
    %cst_9 = arith.constant 1.000000e+00 : f32
    %cst_10 = arith.constant 0.000000e+00 : f32
    %30 = vector.broadcast %cst_9 : f32 to vector<8x128xf32>
    %31 = vector.broadcast %cst_10 : f32 to vector<8x128xf32>
    %32 = arith.select %21, %30, %31 : vector<8x128xi1>, vector<8x128xf32>
    %33 = arith.addf %3, %32 : vector<8x128xf32>
    %cst_11 = arith.constant 1.000000e+00 : f32
    %cst_12 = arith.constant 0.000000e+00 : f32
    %34 = vector.broadcast %cst_11 : f32 to vector<8x128xf32>
    %35 = vector.broadcast %cst_12 : f32 to vector<8x128xf32>
    %36 = arith.select %23, %34, %35 : vector<8x128xi1>, vector<8x128xf32>
    %37 = arith.addf %3, %36 : vector<8x128xf32>
    %c1_i32 = arith.constant 1 : i32
    %c8_i32_13 = arith.constant 8 : i32
    %38 = arith.muli %c1_i32, %c8_i32_13 : i32
    %39 = tpu.assume_multiple %38, 8 : i32
    %40 = arith.index_cast %39 : i32 to index
    %c0_14 = arith.constant 0 : index
    %41 = vector.load %arg2[%40, %c0_14] : memref<16x128xf32, #tpu.memory_space<vmem>>, vector<8x128xf32>
    %42 = arith.index_cast %39 : i32 to index
    %c0_15 = arith.constant 0 : index
    %43 = vector.load %arg3[%42, %c0_15] : memref<16x128xf32, #tpu.memory_space<vmem>>, vector<8x128xf32>
    %cst_16 = arith.constant 0.000000e+00 : f32
    %44 = vector.broadcast %cst_16 : f32 to vector<8x128xf32>
    %45 = arith.maximumf %41, %44 : vector<8x128xf32>
    %46 = arith.mulf %41, %43 : vector<8x128xf32>
    %47 = arith.subf %45, %46 : vector<8x128xf32>
    %48 = math.absf %41 : vector<8x128xf32>
    %cst_17 = arith.constant 0.000000e+00 : f32
    %49 = vector.broadcast %cst_17 : f32 to vector<8x128xf32>
    %50 = arith.subf %49, %48 : vector<8x128xf32>
    %51 = math.exp %50 : vector<8x128xf32>
    %52 = math.log1p %51 : vector<8x128xf32>
    %53 = arith.addf %47, %52 : vector<8x128xf32>
    %cst_18 = arith.constant 5.000000e-01 : f32
    %54 = vector.broadcast %cst_18 : f32 to vector<8x128xf32>
    %55 = arith.cmpf ogt, %43, %54 : vector<8x128xf32>
    %cst_19 = arith.constant 5.000000e-01 : f32
    %56 = vector.broadcast %cst_19 : f32 to vector<8x128xf32>
    %57 = arith.cmpf olt, %43, %56 : vector<8x128xf32>
    %cst_20 = arith.constant 0.000000e+00 : f32
    %58 = vector.broadcast %cst_20 : f32 to vector<8x128xf32>
    %59 = arith.select %55, %53, %58 : vector<8x128xi1>, vector<8x128xf32>
    %60 = arith.addf %26, %59 : vector<8x128xf32>
    %cst_21 = arith.constant 0.000000e+00 : f32
    %61 = vector.broadcast %cst_21 : f32 to vector<8x128xf32>
    %62 = arith.select %57, %53, %61 : vector<8x128xi1>, vector<8x128xf32>
    %63 = arith.addf %29, %62 : vector<8x128xf32>
    %cst_22 = arith.constant 1.000000e+00 : f32
    %cst_23 = arith.constant 0.000000e+00 : f32
    %64 = vector.broadcast %cst_22 : f32 to vector<8x128xf32>
    %65 = vector.broadcast %cst_23 : f32 to vector<8x128xf32>
    %66 = arith.select %55, %64, %65 : vector<8x128xi1>, vector<8x128xf32>
    %67 = arith.addf %33, %66 : vector<8x128xf32>
    %cst_24 = arith.constant 1.000000e+00 : f32
    %cst_25 = arith.constant 0.000000e+00 : f32
    %68 = vector.broadcast %cst_24 : f32 to vector<8x128xf32>
    %69 = vector.broadcast %cst_25 : f32 to vector<8x128xf32>
    %70 = arith.select %57, %68, %69 : vector<8x128xi1>, vector<8x128xf32>
    %71 = arith.addf %37, %70 : vector<8x128xf32>
    %c2_i32 = arith.constant 2 : i32
    %c0_26 = arith.constant 0 : index
    %c0_27 = arith.constant 0 : index
    %c0_28 = arith.constant 0 : index
    %72 = vector.load %arg4[%c0_26, %c0_27, %c0_28] : memref<1x32x128xf32, #tpu.memory_space<vmem>>, vector<1x8x128xf32>
    %73 = vector.shape_cast %72 : vector<1x8x128xf32> to vector<8x128xf32>
    %74 = arith.addf %73, %60 : vector<8x128xf32>
    %c0_29 = arith.constant 0 : index
    %c0_30 = arith.constant 0 : index
    %c0_31 = arith.constant 0 : index
    %75 = vector.load %arg4[%c0_29, %c0_30, %c0_31] : memref<1x32x128xf32, #tpu.memory_space<vmem>>, vector<1x8x128xf32>
    %76 = vector.shape_cast %75 : vector<1x8x128xf32> to vector<8x128xf32>
    %77 = vector.shape_cast %74 : vector<8x128xf32> to vector<1x8x128xf32>
    tpu.vector_store %arg4[%c0_29, %c0_30, %c0_31], %77 {strides = array<i32>} : memref<1x32x128xf32, #tpu.memory_space<vmem>>, vector<1x8x128xf32>,
    %c0_32 = arith.constant 0 : index
    %c8 = arith.constant 8 : index
    %c0_33 = arith.constant 0 : index
    %78 = vector.load %arg4[%c0_32, %c8, %c0_33] : memref<1x32x128xf32, #tpu.memory_space<vmem>>, vector<1x8x128xf32>
    %79 = vector.shape_cast %78 : vector<1x8x128xf32> to vector<8x128xf32>
    %80 = arith.addf %79, %63 : vector<8x128xf32>
    %c0_34 = arith.constant 0 : index
    %c8_35 = arith.constant 8 : index
    %c0_36 = arith.constant 0 : index
    %81 = vector.load %arg4[%c0_34, %c8_35, %c0_36] : memref<1x32x128xf32, #tpu.memory_space<vmem>>, vector<1x8x128xf32>
    %82 = vector.shape_cast %81 : vector<1x8x128xf32> to vector<8x128xf32>
    %83 = vector.shape_cast %80 : vector<8x128xf32> to vector<1x8x128xf32>
    tpu.vector_store %arg4[%c0_34, %c8_35, %c0_36], %83 {strides = array<i32>} : memref<1x32x128xf32, #tpu.memory_space<vmem>>, vector<1x8x128xf32>,
    %c0_37 = arith.constant 0 : index
    %c16 = arith.constant 16 : index
    %c0_38 = arith.constant 0 : index
    %84 = vector.load %arg4[%c0_37, %c16, %c0_38] : memref<1x32x128xf32, #tpu.memory_space<vmem>>, vector<1x8x128xf32>
    %85 = vector.shape_cast %84 : vector<1x8x128xf32> to vector<8x128xf32>
    %86 = arith.addf %85, %67 : vector<8x128xf32>
    %c0_39 = arith.constant 0 : index
    %c16_40 = arith.constant 16 : index
    %c0_41 = arith.constant 0 : index
    %87 = vector.load %arg4[%c0_39, %c16_40, %c0_41] : memref<1x32x128xf32, #tpu.memory_space<vmem>>, vector<1x8x128xf32>
    %88 = vector.shape_cast %87 : vector<1x8x128xf32> to vector<8x128xf32>
    %89 = vector.shape_cast %86 : vector<8x128xf32> to vector<1x8x128xf32>
    tpu.vector_store %arg4[%c0_39, %c16_40, %c0_41], %89 {strides = array<i32>} : memref<1x32x128xf32, #tpu.memory_space<vmem>>, vector<1x8x128xf32>,
    %c0_42 = arith.constant 0 : index
    %c24 = arith.constant 24 : index
    %c0_43 = arith.constant 0 : index
    %90 = vector.load %arg4[%c0_42, %c24, %c0_43] : memref<1x32x128xf32, #tpu.memory_space<vmem>>, vector<1x8x128xf32>
    %91 = vector.shape_cast %90 : vector<1x8x128xf32> to vector<8x128xf32>
    %92 = arith.addf %91, %71 : vector<8x128xf32>
    %c0_44 = arith.constant 0 : index
    %c24_45 = arith.constant 24 : index
    %c0_46 = arith.constant 0 : index
    %93 = vector.load %arg4[%c0_44, %c24_45, %c0_46] : memref<1x32x128xf32, #tpu.memory_space<vmem>>, vector<1x8x128xf32>
    %94 = vector.shape_cast %93 : vector<1x8x128xf32> to vector<8x128xf32>
    %95 = vector.shape_cast %92 : vector<8x128xf32> to vector<1x8x128xf32>
    tpu.vector_store %arg4[%c0_44, %c24_45, %c0_46], %95 {strides = array<i32>} : memref<1x32x128xf32, #tpu.memory_space<vmem>>, vector<1x8x128xf32>,
    return
  }
  func.func @transform_0(%arg0: i32, %arg1: i32) -> (i32, i32) {
    %c1_i32 = arith.constant 1 : i32
    %0 = arith.muli %arg0, %c1_i32 : i32
    %1 = arith.addi %0, %arg1 : i32
    %c0_i32 = arith.constant 0 : i32
    %c0_i32_0 = arith.constant 0 : i32
    return %1, %c0_i32 : i32, i32
  }
  func.func @transform_1(%arg0: i32, %arg1: i32) -> (i32, i32) {
    %c1_i32 = arith.constant 1 : i32
    %0 = arith.muli %arg0, %c1_i32 : i32
    %1 = arith.addi %0, %arg1 : i32
    %c0_i32 = arith.constant 0 : i32
    %c0_i32_0 = arith.constant 0 : i32
    return %1, %c0_i32 : i32, i32
  }
  func.func @transform_2(%arg0: i32, %arg1: i32) -> (i32, i32, i32) {
    %c0_i32 = arith.constant 0 : i32
    %c0_i32_0 = arith.constant 0 : i32
    %c0_i32_1 = arith.constant 0 : i32
    return %arg0, %c0_i32, %c0_i32_0 : i32, i32, i32
  }
}

</mosaic_0001>

<llo_original>
// kernel: tpu_custom_call.1
$region0: #{tpu_custom_call.1}
  #allocation0 [shape = 'u32[]', space=smem, size = 0x4, offset = 0x4, fixed_abs, tag = 'smem constant byte address 0x4 - core index']
  #allocation1 [shape = 'u32[144,128]{1,0:T(1,128)}', space=vmem, size = 0x12000, scoped, tag = 'internal scratch']
  %s0 = inlined_call_operand.hbm [shape: f32[16,128], index: 0, kind: input, shape index: {}]
  %s1 = inlined_call_operand.hbm [shape: f32[16,128], index: 1, kind: input, shape index: {}]
  %s2 = inlined_call_operand.hbm [shape: f32[1,32,128], index: 2, kind: output, shape index: {}]
  %s3 = sld [smem:[#allocation0]]
  $region30: #{tpu_custom_call.1} parent=0
    _
  %s5 = ssub.s32 1, %s3
  %s6 = scalar_select 0, %s5, %s3
  $region1: #{tpu_custom_call.1} parent=0
    #allocation2 [shape = 'u8[8192]{0}', space=vmem, size = 0x2000, scoped, tag = 'input window, operand 0, single buffered']
    #allocation3 [shape = 's32[1]{0}', space=sflag, size = 0x4, scoped, tag = 'scoped memory for tpu_custom_call.1']
    #allocation4 [shape = 's32[1]{0}', space=sflag, size = 0x4, scoped, tag = 'scoped memory for tpu_custom_call.1']
    #allocation5 [shape = 'u8[8192]{0}', space=vmem, size = 0x2000, scoped, tag = 'input window, operand 1, single buffered']
    #allocation6 [shape = 's32[1]{0}', space=sflag, size = 0x4, scoped, tag = 'scoped memory for tpu_custom_call.1']
    #allocation7 [shape = 'u8[16384]{0}', space=vmem, size = 0x4000, scoped, tag = 'output window, operand 0, single buffered']
    %7 = vsyncpa [#allocation3], 0
    %8 = vsyncpa [#allocation6], 0
    %9 = vsyncpa [#allocation4], 0
    // Predicated region
    $region2: #{tpu_custom_call.1} parent=1 // pred_check
      _
    $region3: #{tpu_custom_call.1} parent=1 // pred_check_branch
      %11 = sbr.rel (0) target = $region5
    $region4: #{tpu_custom_call.1} parent=1 // pred_region
      %s12 = sadd.s32 0, 0
      %s13 = smul.u32 2, %s12
      %s15 = ssub.s32 256, 256
      %16 = vsyncadd [#allocation3], %s15
      %s17 = smul.addr %s13, 128
      %s18 = scalar_lea.hbm %s0, %s17
      %s19 = sshll.u32 [#allocation2], 4
      %s20 = int_to_ptr.vmem [resolvable:$true] %s19
      %25 = dma.hbm_to_vmem [thread:$0]  %s18, 256, %s20, [#allocation3], 128, 128, 8
    $region5: #{tpu_custom_call.1} parent=1 // pred_fallthru
      _
    // Predicated region
    $region6: #{tpu_custom_call.1} parent=1 // pred_check
      _
    $region7: #{tpu_custom_call.1} parent=1 // pred_check_branch
      %27 = sbr.rel (0) target = $region9
    $region8: #{tpu_custom_call.1} parent=1 // pred_region
      %s28 = sadd.s32 0, 0
      %s29 = smul.u32 2, %s28
      %s31 = ssub.s32 256, 256
      %32 = vsyncadd [#allocation6], %s31
      %s33 = smul.addr %s29, 128
      %s34 = scalar_lea.hbm %s1, %s33
      %s35 = sshll.u32 [#allocation5], 4
      %s36 = int_to_ptr.vmem [resolvable:$true] %s35
      %41 = dma.hbm_to_vmem [thread:$0]  %s34, 256, %s36, [#allocation6], 128, 128, 8
    $region9: #{tpu_custom_call.1} parent=1 // pred_fallthru
      _
    // Predicated region
    $region10: #{tpu_custom_call.1} parent=1 // pred_check
      _
    $region11: #{tpu_custom_call.1} parent=1 // pred_check_branch
      %43 = sbr.rel (0) target = $region13
    $region12: #{tpu_custom_call.1} parent=1 // pred_region
      %44 = dma.done [#allocation3], 256
    $region13: #{tpu_custom_call.1} parent=1 // pred_fallthru
      _
    // Predicated region
    $region14: #{tpu_custom_call.1} parent=1 // pred_check
      _
    $region15: #{tpu_custom_call.1} parent=1 // pred_check_branch
      %46 = sbr.rel (0) target = $region17
    $region16: #{tpu_custom_call.1} parent=1 // pred_region
      %47 = dma.done [#allocation6], 256
    $region17: #{tpu_custom_call.1} parent=1 // pred_fallthru
      _
    %s48 = sadd.s32 0, 0
    %s49 = smul.u32 2, %s48
    %s50 = sadd.s32 0, 0
    %s51 = smul.u32 2, %s50
    %p52 = scmp.eq.s32.totalorder 0, 0
    // Predicated region
    $region18: #{tpu_custom_call.1} parent=1 // pred_check
      %p53 = pneg %p52
    $region19: #{tpu_custom_call.1} parent=1 // pred_check_branch
      %55 = sbr.rel (%p53) target = $region21
    $region20: #{tpu_custom_call.1} parent=1 // pred_region
      %56 = vst [vmem:[#allocation7] sm:$0xff] 0.0
      %57 = vst [vmem:[#allocation7 + $0x8] sm:$0xff] 0.0
      %58 = vst [vmem:[#allocation7 + $0x10] sm:$0xff] 0.0
      %59 = vst [vmem:[#allocation7 + $0x18] sm:$0xff] 0.0
    $region21: #{tpu_custom_call.1} parent=1 // pred_fallthru
      _
    %v60 = vld [vmem:[#allocation2] sm:$0xff]
    %v61 = vld [vmem:[#allocation5] sm:$0xff]
    %v62 = vmax.f32 %v60, 0.0
    %v63 = vmul.f32 %v60, %v61
    %v64 = vsub.f32 %v62, %v63
    %v65 = vand.u32 2147483647, %v60
    %v66 = vsub.f32 0.0, %v65
    %v67 = vmul.f32 %v66, 1.442695
    %v68 = vpow.pop %v67
    %v69 = vadd.f32 %v68, 1.0
    %v70 = vlog2.pop %v69
    %v71 = vmul.f32 %v70, 0.6931472
    %v72 = vmul.f32 -0.5, %v68
    %v73 = vadd.f32 %v72, 1.0
    %v74 = vmul.f32 %v73, %v68
    %v75 = vand.u32 2147483647, %v68
    %vm76 = vcmp.lt.f32.partialorder %v75, 0.0004427343
    %v77 = vsel %vm76, %v74, %v71
    %v78 = vadd.f32 %v64, %v77
    %vm79 = vcmp.gt.f32.partialorder %v61, 0.5
    %vm80 = vcmp.lt.f32.partialorder %v61, 0.5
    %v81 = vsel %vm79, %v78, 0.0
    %v82 = vadd.f32 %v81, 0.0
    %v83 = vsel %vm80, %v78, 0.0
    %v84 = vadd.f32 %v83, 0.0
    %v85 = vsel %vm79, 1.0, 0.0
    %v86 = vadd.f32 %v85, 0.0
    %v87 = vsel %vm80, 1.0, 0.0
    %v88 = vadd.f32 %v87, 0.0
    %s89 = scalar_lea.vmem [#allocation2], 8
    %v90 = vld [vmem:[%s89] sm:$0xff]
    %s91 = scalar_lea.vmem [#allocation5], 8
    %v92 = vld [vmem:[%s91] sm:$0xff]
    %v93 = vmax.f32 %v90, 0.0
    %v94 = vmul.f32 %v90, %v92
    %v95 = vsub.f32 %v93, %v94
    %v96 = vand.u32 2147483647, %v90
    %v97 = vsub.f32 0.0, %v96
    %v98 = vmul.f32 %v97, 1.442695
    %v99 = vpow.pop %v98
    %v100 = vadd.f32 %v99, 1.0
    %v101 = vlog2.pop %v100
    %v102 = vmul.f32 %v101, 0.6931472
    %v103 = vmul.f32 -0.5, %v99
    %v104 = vadd.f32 %v103, 1.0
    %v105 = vmul.f32 %v104, %v99
    %v106 = vand.u32 2147483647, %v99
    %vm107 = vcmp.lt.f32.partialorder %v106, 0.0004427343
    %v108 = vsel %vm107, %v105, %v102
    %v109 = vadd.f32 %v95, %v108
    %vm110 = vcmp.gt.f32.partialorder %v92, 0.5
    %vm111 = vcmp.lt.f32.partialorder %v92, 0.5
    %v112 = vsel %vm110, %v109, 0.0
    %v113 = vadd.f32 %v82, %v112
    %v114 = vsel %vm111, %v109, 0.0
    %v115 = vadd.f32 %v84, %v114
    %v116 = vsel %vm110, 1.0, 0.0
    %v117 = vadd.f32 %v86, %v116
    %v118 = vsel %vm111, 1.0, 0.0
    %v119 = vadd.f32 %v88, %v118
    %v120 = vld [vmem:[#allocation7] sm:$0xff]
    %v121 = vadd.f32 %v120, %v113
    %122 = vst [vmem:[#allocation7] sm:$0xff] %v121
    %v123 = vld [vmem:[#allocation7 + $0x8] sm:$0xff]
    %v124 = vadd.f32 %v123, %v115
    %125 = vst [vmem:[#allocation7 + $0x8] sm:$0xff] %v124
    %v126 = vld [vmem:[#allocation7 + $0x10] sm:$0xff]
    %v127 = vadd.f32 %v126, %v117
    %128 = vst [vmem:[#allocation7 + $0x10] sm:$0xff] %v127
    %v129 = vld [vmem:[#allocation7 + $0x18] sm:$0xff]
    %v130 = vadd.f32 %v129, %v119
    %131 = vst [vmem:[#allocation7 + $0x18] sm:$0xff] %v130
    // Predicated region
    $region22: #{tpu_custom_call.1} parent=1 // pred_check
      _
    $region23: #{tpu_custom_call.1} parent=1 // pred_check_branch
      %133 = sbr.rel (0) target = $region25
    $region24: #{tpu_custom_call.1} parent=1 // pred_region
      %s135 = ssub.s32 512, 512
      %136 = vsyncadd [#allocation4], %s135
      %s137 = sshll.u32 [#allocation7], 4
      %s138 = int_to_ptr.vmem [resolvable:$true] %s137
      %143 = dma.vmem_to_hbm [thread:$0]  %s138, 512, %s2, [#allocation4], 128, 128, 8
    $region25: #{tpu_custom_call.1} parent=1 // pred_fallthru
      _
    // Predicated region
    $region26: #{tpu_custom_call.1} parent=1 // pred_check
      _
    $region27: #{tpu_custom_call.1} parent=1 // pred_check_branch
      %145 = sbr.rel (0) target = $region29
    $region28: #{tpu_custom_call.1} parent=1 // pred_region
      %146 = dma.done [#allocation4], 512
    $region29: #{tpu_custom_call.1} parent=1 // pred_fallthru
      _
    %147 = vsyncpa [#allocation3], 1
    %148 = vsyncpa [#allocation6], 1
    %149 = vsyncpa [#allocation4], 1

</llo_original>
